<compile_context>
chip_gen: v7x
topology: tpu7x:2x2x1
jax: 0.10.0
libtpu: 0.0.40
codegen_flags: <defaults>
</compile_context>

<pallas_src>
import functools

import jax
import jax.numpy as jnp
from jax.experimental import pallas as pl
from jax.experimental.pallas import tpu as pltpu

_INT_MIN = -2147483648
_ELEMWISE_BLOCK_BYTES = 4 * 1024 * 1024   # per-buffer elementwise block target
_BIHALF_BLOCK_BYTES = 2 * 1024 * 1024     # 32-bit key bytes per bihalf block


# ---------------------------------------------------------------------------
# Elementwise kernels (tanh / ste / sigmoid)
# ---------------------------------------------------------------------------
def _tanh_kernel(x_ref, o_ref):
    # Upcast inside the kernel: keeps bf16 as the HBM storage dtype (the only
    # thing that matters for these mem-bound ops) while staying on the f32
    # VPU/EUP path (v5e has no bf16 VPU/EUP).
    o_ref[...] = jnp.tanh(x_ref[...].astype(jnp.float32)).astype(o_ref.dtype)


def _ste_kernel(x_ref, o_ref):
    # StraightThroughEstimator.forward: (input > 0).float()
    o_ref[...] = (x_ref[...] > 0).astype(o_ref.dtype)


def _sigmoid_kernel(x_ref, o_ref):
    # sigmoid(x) - 0.5 == 0.5 * tanh(0.5 * x): one EUP transcendental instead
    # of the exp + reciprocal chain.
    xf = x_ref[...].astype(jnp.float32)
    o_ref[...] = (0.5 * jnp.tanh(0.5 * xf)).astype(o_ref.dtype)


# ---------------------------------------------------------------------------
# BiHalf kernel: per column, top N/2 values (stable descending order) -> +1,
# rest -> -1.  Threshold-select formulation:
#   1. map float -> monotone int32 key (exact),
#   2. greedy 32-pass bitwise search for T = the (N/2)-th largest key,
#   3. rows with key > T get +1; among rows with key == T the first
#      (N/2 - #greater) by row index get +1 (resolved with a log2(N)-pass
#      bitwise search on the row-index cutoff).
# Only the feature axis is tiled; every block sees the full column.
# ---------------------------------------------------------------------------
def _bihalf_kernel(x_ref, o_ref):
    n = x_ref.shape[0]
    half = n // 2

    # Monotone int32 ordering key (bf16/f32 -> f32 upcast is exact).
    u = x_ref[...].astype(jnp.float32)                       # (N, bc)
    b = pltpu.bitcast(u, jnp.int32)
    b = jnp.where(b == jnp.int32(_INT_MIN), jnp.int32(0), b)  # -0.0 == +0.0
    key = jnp.where(b < 0, b ^ jnp.int32(0x7FFFFFFF), b)      # signed-monotone

    cols = key.shape[1]

    def count_ge(thresh):                                    # thresh: (1, cols)
        return jnp.sum((key >= thresh).astype(jnp.int32), axis=0, keepdims=True)

    # --- pass 1: per-column threshold T = the (N/2)-th largest key ----------
    # Greedy bitwise search for the largest thr with count(key >= thr) >= N/2.
    zero = jnp.zeros((1, cols), jnp.int32)
    thr = jnp.where(count_ge(zero) >= half, zero,
                    jnp.full((1, cols), _INT_MIN, jnp.int32))
    for bit in range(30, -1, -1):                            # 31 static passes
        cand = thr | jnp.int32(1 << bit)
        thr = jnp.where(count_ge(cand) >= half, cand, thr)

    # --- pass 2: resolve ties by row index (stable descending sort) ---------
    gt = key > thr                                           # definite +1 rows
    g_cnt = jnp.sum(gt.astype(jnp.int32), axis=0, keepdims=True)
    r = half - g_cnt                                         # ties to promote
    eq = key == thr
    row = jax.lax.broadcasted_iota(jnp.int32, key.shape, 0)

    def count_eq_below(c):                                   # c: (1, cols)
        m = jnp.logical_and(eq, row < c)
        return jnp.sum(m.astype(jnp.int32), axis=0, keepdims=True)

    # Largest row cutoff `cut` with count(eq & row < cut) < r; then the tied
    # rows with row <= cut are exactly the first r ties per column.
    cut = jnp.zeros((1, cols), jnp.int32)
    nbits = max(1, (n - 1).bit_length())
    for bit in range(nbits - 1, -1, -1):                     # ceil(log2 N) passes
        cand = cut | jnp.int32(1 << bit)
        cut = jnp.where(count_eq_below(cand) < r, cand, cut)
    take_tie = jnp.logical_and(eq, jnp.logical_and(row <= cut, r > 0))

    plus = jnp.logical_or(gt, take_tie)
    o_ref[...] = jnp.where(plus, 1.0, -1.0).astype(o_ref.dtype)


# ---------------------------------------------------------------------------
# Compiler params / tiling helpers
# ---------------------------------------------------------------------------
@functools.lru_cache(maxsize=None)
def _vmem_limit_bytes():
    # Generation-dependent scoped-VMEM limit: ~3/4 of physical VMEM, capped.
    # (v5e/v6e: 128 MiB physical -> ~96 MiB; v7x: 64 MiB -> 48 MiB.)
    try:
        cap = int(getattr(pltpu.get_tpu_info(), "vmem_capacity_bytes", 0))
        if cap > 0:
            return int(min(cap * 3 // 4, 100 * 1024 * 1024))
    except Exception:
        pass
    return 48 * 1024 * 1024


def _compiler_params():
    return pltpu.CompilerParams(
        dimension_semantics=("parallel",),
        vmem_limit_bytes=_vmem_limit_bytes(),
    )


def _pick_lane_width(total):
    for w in (1024, 512, 256, 128):
        if total % w == 0:
            return w
    return None


def _elementwise_2d(kernel, x):
    rows, width = x.shape
    itemsize = jnp.dtype(x.dtype).itemsize
    # Block rows: multiple of 8, ~4 MiB per block (double-buffered in+out is
    # well under the VMEM limit), full extent for small arrays.
    br = max(8, min(rows, _ELEMWISE_BLOCK_BYTES // max(1, width * itemsize)))
    br = (br // 8) * 8
    if br <= 0 or br >= rows:
        br = rows
    return pl.pallas_call(
        kernel,
        out_shape=jax.ShapeDtypeStruct((rows, width), x.dtype),
        grid_spec=pltpu.PrefetchScalarGridSpec(
            num_scalar_prefetch=0,
            grid=(pl.cdiv(rows, br),),           # ragged last block is masked
            in_specs=[pl.BlockSpec((br, width), lambda i: (i, 0))],
            out_specs=pl.BlockSpec((br, width), lambda i: (i, 0)),
        ),
        compiler_params=_compiler_params(),
    )(x)


def _elementwise_call(kernel, x):
    n, d = x.shape
    if d % 128 != 0:
        # Narrow / lane-unaligned feature dim: present a lane-dense slab so
        # stores are full `vst` instead of masked partial stores (elementwise
        # ops are layout-agnostic; the reshape is free at HBM level).
        w = _pick_lane_width(n * d)
        if w is not None:
            out = _elementwise_2d(kernel, x.reshape((n * d) // w, w))
            return out.reshape(n, d)
        # TODO(synk): pad to a lane multiple when n*d is not divisible by 128;
        # the direct path below is still correct, just uses masked stores.
    return _elementwise_2d(kernel, x)


def _bihalf_call(x):
    n, d = x.shape
    # The ranking needs every row of a column, so only the feature axis is
    # tiled.  Column block sized so the 32-bit key block is ~2 MiB.
    if d % 128 == 0 and d > 128:
        cap_cols = (_BIHALF_BLOCK_BYTES // max(1, n * 4)) // 128 * 128
        bc = min(d, max(128, cap_cols))
    else:
        bc = d                                   # full extent (always legal)
    return pl.pallas_call(
        _bihalf_kernel,
        out_shape=jax.ShapeDtypeStruct((n, d), x.dtype),
        grid_spec=pltpu.PrefetchScalarGridSpec(
            num_scalar_prefetch=0,
            grid=(pl.cdiv(d, bc),),
            in_specs=[pl.BlockSpec((n, bc), lambda j: (0, j))],
            out_specs=pl.BlockSpec((n, bc), lambda j: (0, j)),
        ),
        compiler_params=_compiler_params(),
    )(x)


_ELEMENTWISE_KERNELS = {
    "tanh": _tanh_kernel,
    "ste": _ste_kernel,
    "sigmoid": _sigmoid_kernel,
}


# ---------------------------------------------------------------------------
# Wrapper (equivalent of BinaryActivation.forward)
# ---------------------------------------------------------------------------
@functools.partial(jax.jit, static_argnames=("activation_type",))
def binary_activation(x, activation_type="tanh"):
    # TODO(synk): custom backward passes (STE identity grad, BiHalf
    # gamma*(U-B)/numel grad) are not part of the forward kernel.
    if activation_type in _ELEMENTWISE_KERNELS:
        return _elementwise_call(_ELEMENTWISE_KERNELS[activation_type], x)
    if activation_type == "bihalf":
        return _bihalf_call(x)
    raise ValueError(f"Unknown activation type: {activation_type}")


# ---------------------------------------------------------------------------
# Pure-JAX references for sanity checking
# ---------------------------------------------------------------------------
def _ref(x, activation_type):
    xf = x.astype(jnp.float32)
    if activation_type == "tanh":
        return jnp.tanh(xf)
    if activation_type == "ste":
        return (xf > 0).astype(jnp.float32)
    if activation_type == "sigmoid":
        return jax.nn.sigmoid(xf) - 0.5
    if activation_type == "bihalf":
        n = xf.shape[0]
        order = jnp.argsort(-xf, axis=0, stable=True)        # stable descending
        rank = jnp.argsort(order, axis=0, stable=True)
        return jnp.where(rank < n // 2, 1.0, -1.0)
    raise ValueError(activation_type)


if __name__ == "__main__":
    key = jax.random.PRNGKey(0)

    for (N, D) in ((8, 32), (16, 256)):
        key, sub = jax.random.split(key)
        x = jax.random.normal(sub, (N, D), dtype=jnp.float32)
        for act in ("tanh", "ste", "sigmoid", "bihalf"):
            out = binary_activation(x, activation_type=act)
            jax.block_until_ready(out)
            ref = _ref(x, act)
            assert out.shape == ref.shape, (act, out.shape, ref.shape)
            assert out.dtype == x.dtype, (act, out.dtype)
            assert jnp.allclose(out.astype(jnp.float32), ref, atol=1e-5), \
                f"mismatch for {act} at shape {(N, D)}"
        # bihalf invariant: each column has exactly N/2 ones
        b = binary_activation(x, activation_type="bihalf")
        assert jnp.all(jnp.sum(b == 1.0, axis=0) == N // 2)

    # dtype follows input: bf16 in -> bf16 out (no wrapper-side f32 cast)
    key, sub = jax.random.split(key)
    xb = jax.random.normal(sub, (8, 32), dtype=jnp.float32).astype(jnp.bfloat16)
    tb = binary_activation(xb, activation_type="tanh")
    jax.block_until_ready(tb)
    assert tb.dtype == jnp.bfloat16
    assert jnp.allclose(tb.astype(jnp.float32),
                        jnp.tanh(xb.astype(jnp.float32)), atol=3e-2)
    bb = binary_activation(xb, activation_type="bihalf")
    jax.block_until_ready(bb)
    assert jnp.all(jnp.sum(bb == 1.0, axis=0) == 4)

    print("KERNEL_OK")
</pallas_src>

<mosaic_0001>
module attributes {stable_mosaic.version = 11 : i64} {
  func.func @_tanh_kernel(%arg0: i32, %arg1: memref<1x256xf32, #tpu.memory_space<vmem>>, %arg2: memref<1x256xf32, #tpu.memory_space<vmem>>) attributes {dimension_semantics = [#tpu.dimension_semantics<parallel>], iteration_bounds = array<i64: 1>, scalar_prefetch = 0 : i64, scratch_operands = 0 : i64, tpu.core_type = #tpu.core_type<tc>, window_params = [{transform_indices = @transform_0, window_bounds = array<i64: 1, 256>}, {transform_indices = @transform_1, window_bounds = array<i64: 1, 256>}]} {
    %c0 = arith.constant 0 : index
    %c0_0 = arith.constant 0 : index
    %0 = vector.load %arg1[%c0, %c0_0] : memref<1x256xf32, #tpu.memory_space<vmem>>, vector<1x256xf32>
    %1 = math.tanh %0 : vector<1x256xf32>
    %c0_1 = arith.constant 0 : index
    %c0_2 = arith.constant 0 : index
    %2 = vector.load %arg2[%c0_1, %c0_2] : memref<1x256xf32, #tpu.memory_space<vmem>>, vector<1x256xf32>
    tpu.vector_store %arg2[%c0_1, %c0_2], %1 {strides = array<i32>} : memref<1x256xf32, #tpu.memory_space<vmem>>, vector<1x256xf32>,
    return
  }
  func.func @transform_0(%arg0: i32) -> (i32, i32) {
    %c0_i32 = arith.constant 0 : i32
    %c0_i32_0 = arith.constant 0 : i32
    return %arg0, %c0_i32 : i32, i32
  }
  func.func @transform_1(%arg0: i32) -> (i32, i32) {
    %c0_i32 = arith.constant 0 : i32
    %c0_i32_0 = arith.constant 0 : i32
    return %arg0, %c0_i32 : i32, i32
  }
}

</mosaic_0001>

<llo_original>
// kernel: binary_activation.1
$region0: #{binary_activation.1}
  #allocation0 [shape = 'u32[]', space=smem, size = 0x4, offset = 0x4, fixed_abs, tag = 'smem constant byte address 0x4 - core index']
  #allocation1 [shape = 'u32[144,128]{1,0:T(1,128)}', space=vmem, size = 0x12000, scoped, tag = 'internal scratch']
  %s0 = inlined_call_operand.vmem [shape: f32[1,256], index: 0, kind: input, shape index: {}]
  %s1 = inlined_call_operand.vmem [shape: f32[1,256], index: 1, kind: output, shape index: {}]
  %s2 = sld [smem:[#allocation0]]
  $region14: #{binary_activation.1} parent=0
    _
  %s4 = ssub.s32 1, %s2
  %s5 = scalar_select 0, %s4, %s2
  // Predicated region
  $region2: #{binary_activation.1} parent=0 // pred_check
    _
  $region3: #{binary_activation.1} parent=0 // pred_check_branch
    %7 = sbr.rel (0) target = $region5
  $region4: #{binary_activation.1} parent=0 // pred_region
    _
  $region5: #{binary_activation.1} parent=0 // pred_fallthru
    _
  %v8 = vld [vmem:[%s0] sm:$0x3]
  %v9 = vtanh.pop %v8
  %v10 = vlaneseq
  %vm11 = vcmp.ge.s32.totalorder %v10, 0
  %vm12 = vcmp.lt.s32.totalorder %v10, 256
  %vm13 = vmand %vm11, %vm12
  %14 = vst.msk [vmem:[%s1] sm:$0x3] %vm13, %v9
  // Predicated region
  $region6: #{binary_activation.1} parent=0 // pred_check
    _
  $region7: #{binary_activation.1} parent=0 // pred_check_branch
    %16 = sbr.rel (0) target = $region9
  $region8: #{binary_activation.1} parent=0 // pred_region
    _
  $region9: #{binary_activation.1} parent=0 // pred_fallthru
    _
  // Predicated region
  $region10: #{binary_activation.1} parent=0 // pred_check
    _
  $region11: #{binary_activation.1} parent=0 // pred_check_branch
    %18 = sbr.rel (0) target = $region13
  $region12: #{binary_activation.1} parent=0 // pred_region
    _
  $region13: #{binary_activation.1} parent=0 // pred_fallthru
    _

</llo_original>
